<compile_context>
chip_gen: v5e
topology: v5e:2x2
jax: 0.10.0
libtpu: 0.0.40
codegen_flags: <defaults>
</compile_context>

<pallas_src>
import jax
import jax.numpy as jnp
from jax.experimental import pallas as pl
from jax.experimental.pallas import tpu as pltpu


def sparse_dgcnn_kernel(u_ref, x_ref, w1t_ref, c1t_ref, wfct_ref, bfct_ref, out_ref):
    """One grid step = tb batch samples, batch in lanes.

    u_ref   : (N, 1, 1)  f32   conv2 row folded through A_hat^K
    x_ref   : (N, F, tb) bf16  node features, batch in lanes
    w1t_ref : (H, F)     bf16  conv1.lin.weight (i.e. w1.T)
    c1t_ref : (H, 1)     f32   folded bias  sum(w2)*b1 + b2
    wfct_ref: (C, H)     bf16  fc.weight    (i.e. wfc.T)
    bfct_ref: (C, 1)     f32   fc.bias
    out_ref : (C, tb)    f32
    """
    # Node reduction z[f, b] = sum_n u[n] * x[n, f, b].  f32 accumulation on the
    # VPU; N is small and the kernel is bytes-bound, not FLOPs-bound.
    z = jnp.sum(u_ref[...] * x_ref[...], axis=0)                       # (F, tb) f32
    # NewSGConv linear (MXU, low-precision inputs / f32 accumulation) + folded bias.
    y = jnp.dot(w1t_ref[...], z.astype(w1t_ref.dtype),
                preferred_element_type=jnp.float32) + c1t_ref[...]     # (H, tb) f32
    y = jnp.maximum(y, 0.0)                                            # ReLU
    # Final fully connected layer.
    out = jnp.dot(wfct_ref[...], y.astype(wfct_ref.dtype),
                  preferred_element_type=jnp.float32) + bfct_ref[...]  # (C, tb) f32
    out_ref[...] = out.astype(out_ref.dtype)


def build_normalized_adjacency(edge_weight_full):
    """Glue: dense symmetric W from lower-tri params (incl. diag) + SGConv norm."""
    N = edge_weight_full.shape[0]
    tril_mask = jnp.tril(jnp.ones((N, N), dtype=bool))         # offset=0 lower triangle
    W = jnp.where(tril_mask, edge_weight_full, 0.0)
    W = W + W.T - jnp.diag(jnp.diag(W))                        # symmetrize, keep diag
    deg = jnp.sum(jnp.abs(W), axis=1)                          # scatter_add(|w|, row)
    dinv = jnp.where(deg > 0.0, jax.lax.rsqrt(deg), 0.0)       # inf -> 0
    return dinv[:, None] * W * dinv[None, :]


def fold_propagation(adj_norm, w2, b1, b2, K):
    """Weight-only folding — hoist out of the per-forward path (once per update).

      u  = conv2_w @ A_hat^K                        -> (N,)
      c1 = sum(conv2_w) * conv1.bias + conv2.bias   -> (1, H)
    """
    u = w2.astype(jnp.float32).reshape(1, -1)                  # (1, N)
    for _ in range(K):
        u = u @ adj_norm.astype(jnp.float32)
    c1 = jnp.sum(w2) * b1 + b2                                 # (1, H)
    return u.reshape(-1), c1


def _pick_tb(B, N, F, itemsize, target_bytes=2 << 20):
    """Batch tile: lane-dense (multiple of 128), >= 2 grid steps when possible,
    X block around target_bytes (well under every generation's VMEM default,
    including v5e's 16 MiB scoped limit and v7x's 64 MiB physical)."""
    if B % 128 != 0:
        return B                                   # full-dim blocks are always legal
    f_pad = -(-F // 8) * 8
    tb = 128
    while (B % (tb * 2) == 0 and tb * 2 <= B // 2
           and N * f_pad * (tb * 2) * itemsize <= target_bytes):
        tb *= 2
    return tb


def sparse_dgcnn_apply(X, u, c1, w1, wfc, bfc, *, tb=None, compute_dtype=jnp.bfloat16):
    """Forward given pre-folded (u, c1).  X: (B, N, F) -> (B, num_classes)."""
    B, N, F_ = X.shape
    H = w1.shape[1]
    C = wfc.shape[1]

    # Batch-in-lanes layouts (one extra HBM pass for the X transpose; everything
    # downstream is lane-dense).
    xt = jnp.transpose(X, (1, 2, 0)).astype(compute_dtype)     # (N, F, B)
    w1t = w1.T.astype(compute_dtype)                           # (H, F)
    wfct = wfc.T.astype(compute_dtype)                         # (C, H)
    u_col = u.reshape(N, 1, 1).astype(jnp.float32)
    c1t = c1.reshape(H, 1).astype(jnp.float32)
    bfct = bfc.reshape(C, 1).astype(jnp.float32)

    if tb is None:
        tb = _pick_tb(B, N, F_, jnp.dtype(compute_dtype).itemsize)
    assert B % tb == 0, "batch must be divisible by the per-step tile"
    assert tb == B or tb % 128 == 0, "tb must be lane-dense (x128) or the full batch"
    steps = B // tb

    out_t = pl.pallas_call(
        sparse_dgcnn_kernel,
        out_shape=jax.ShapeDtypeStruct((C, B), jnp.float32),
        grid_spec=pltpu.PrefetchScalarGridSpec(
            num_scalar_prefetch=0,
            grid=(steps,),
            in_specs=[
                pl.BlockSpec((N, 1, 1), lambda i: (0, 0, 0)),    # u            (const, tiny)
                pl.BlockSpec((N, F_, tb), lambda i: (0, 0, i)),  # per-step X slab
                pl.BlockSpec((H, F_), lambda i: (0, 0)),         # conv1 weight (const, tiny)
                pl.BlockSpec((H, 1), lambda i: (0, 0)),          # folded bias  (const, tiny)
                pl.BlockSpec((C, H), lambda i: (0, 0)),          # fc weight    (const, tiny)
                pl.BlockSpec((C, 1), lambda i: (0, 0)),          # fc bias      (const, tiny)
            ],
            out_specs=pl.BlockSpec((C, tb), lambda i: (0, i)),   # lane-dense writeback
        ),
        compiler_params=pltpu.CompilerParams(
            dimension_semantics=("parallel",)),                  # megacore sharding on v7x
    )(u_col, xt, w1t, c1t, wfct, bfct)
    return out_t.T                                               # (B, C)


def sparse_dgcnn_forward(X, adj_norm, w1, b1, w2, b2, wfc, bfc, *, K, tb=None,
                         compute_dtype=jnp.bfloat16):
    """Convenience wrapper: fold weights, then apply.  In a serving loop call
    fold_propagation() once per weight update and reuse sparse_dgcnn_apply()."""
    u, c1 = fold_propagation(adj_norm, w2, b1, b2, K)
    return sparse_dgcnn_apply(X, u, c1, w1, wfc, bfc, tb=tb, compute_dtype=compute_dtype)


def _reference_forward(X, adj, w1, b1, w2, b2, wfc, bfc, K):
    """Plain-JAX f32 reference following the PyTorch module step by step."""
    h = X.astype(jnp.float32)
    for _ in range(K):
        h = jnp.einsum("ij,bjf->bif", adj, h)
    h = h @ w1 + b1
    y = jnp.maximum(jnp.einsum("n,bnh->bh", w2[0], h) + b2[0, 0], 0.0)
    return y @ wfc + bfc


if __name__ == "__main__":
    # Small shapes consistent with the module's forward.
    B, N, F, H, C, K = 2, 16, 16, 32, 4, 2   # batch, nodes, features, hiddens, classes, layers

    key = jax.random.PRNGKey(0)
    k_x, k_ew, k_w1, k_b1, k_w2, k_b2, k_wfc, k_bfc, k_xbig = jax.random.split(key, 9)

    X = jax.random.normal(k_x, (B, N, F), jnp.float32)

    # Deterministic parameter init (synthetic; PyTorch-style uniform(-1/sqrt(fan_in), ..)).
    def uinit(k, shape, fan_in):
        bound = 1.0 / float(fan_in) ** 0.5
        return jax.random.uniform(k, shape, jnp.float32, -bound, bound)

    edge_weight_full = jax.random.uniform(k_ew, (N, N), jnp.float32)  # learnable edge weights
    adj = build_normalized_adjacency(edge_weight_full)

    w1 = uinit(k_w1, (F, H), F)      # conv1.lin.weight transposed
    b1 = uinit(k_b1, (1, H), F)      # conv1.lin.bias
    w2 = uinit(k_w2, (1, N), N)      # conv2 (Conv1d N->1, k=1) weight
    b2 = uinit(k_b2, (1, 1), N)      # conv2 bias
    wfc = uinit(k_wfc, (H, C), H)    # fc.weight transposed
    bfc = uinit(k_bfc, (1, C), H)    # fc.bias

    # ---- 1) f32 path: tight semantic check against the step-by-step reference ----
    out_f32 = sparse_dgcnn_forward(X, adj, w1, b1, w2, b2, wfc, bfc, K=K,
                                   compute_dtype=jnp.float32)
    out_f32 = jax.block_until_ready(out_f32)
    ref = _reference_forward(X, adj, w1, b1, w2, b2, wfc, bfc, K)
    assert out_f32.shape == (B, C)
    assert jnp.allclose(out_f32, ref, atol=1e-3, rtol=1e-3), (out_f32, ref)

    # ---- 2) bf16 fast path (production default), loose tolerance vs f32 ref ----
    out_bf16 = jax.block_until_ready(
        sparse_dgcnn_forward(X, adj, w1, b1, w2, b2, wfc, bfc, K=K))
    assert jnp.allclose(out_bf16, ref, atol=2e-2, rtol=2e-2), (out_bf16, ref)

    # ---- 3) larger batch: exercises the tiled (tb=128, steps>1) lane-dense path ----
    B_big = 256
    X_big = jax.random.normal(k_xbig, (B_big, N, F), jnp.float32)
    out_big = jax.block_until_ready(
        sparse_dgcnn_forward(X_big, adj, w1, b1, w2, b2, wfc, bfc, K=K))
    ref_big = _reference_forward(X_big, adj, w1, b1, w2, b2, wfc, bfc, K)
    assert out_big.shape == (B_big, C)
    assert jnp.allclose(out_big, ref_big, atol=2e-2, rtol=2e-2), (out_big, ref_big)

    print("KERNEL_OK")
</pallas_src>

<mosaic_0001>
module attributes {stable_mosaic.version = 11 : i64} {
  func.func @sparse_dgcnn_kernel(%arg0: i32, %arg1: memref<16x1x1xf32, #tpu.memory_space<vmem>>, %arg2: memref<16x16x2xf32, #tpu.memory_space<vmem>>, %arg3: memref<32x16xf32, #tpu.memory_space<vmem>>, %arg4: memref<32x1xf32, #tpu.memory_space<vmem>>, %arg5: memref<4x32xf32, #tpu.memory_space<vmem>>, %arg6: memref<4x1xf32, #tpu.memory_space<vmem>>, %arg7: memref<4x2xf32, #tpu.memory_space<vmem>>) attributes {dimension_semantics = [#tpu.dimension_semantics<parallel>], iteration_bounds = array<i64: 1>, scalar_prefetch = 0 : i64, scratch_operands = 0 : i64, tpu.core_type = #tpu.core_type<tc>, window_params = [{pipeline_mode = #tpu.pipeline_mode<synchronous>, transform_indices = @transform_0, window_bounds = array<i64: 16, 1, 1>}, {transform_indices = @transform_1, window_bounds = array<i64: 16, 16, 2>}, {pipeline_mode = #tpu.pipeline_mode<synchronous>, transform_indices = @transform_2, window_bounds = array<i64: 32, 16>}, {pipeline_mode = #tpu.pipeline_mode<synchronous>, transform_indices = @transform_3, window_bounds = array<i64: 32, 1>}, {pipeline_mode = #tpu.pipeline_mode<synchronous>, transform_indices = @transform_4, window_bounds = array<i64: 4, 32>}, {pipeline_mode = #tpu.pipeline_mode<synchronous>, transform_indices = @transform_5, window_bounds = array<i64: 4, 1>}, {transform_indices = @transform_6, window_bounds = array<i64: 4, 2>}]} {
    %c0 = arith.constant 0 : index
    %c0_0 = arith.constant 0 : index
    %c0_1 = arith.constant 0 : index
    %0 = vector.load %arg1[%c0, %c0_0, %c0_1] : memref<16x1x1xf32, #tpu.memory_space<vmem>>, vector<16x1x1xf32>
    %c0_2 = arith.constant 0 : index
    %c0_3 = arith.constant 0 : index
    %c0_4 = arith.constant 0 : index
    %1 = vector.load %arg2[%c0_2, %c0_3, %c0_4] : memref<16x16x2xf32, #tpu.memory_space<vmem>>, vector<16x16x2xf32>
    %2 = vector.broadcast %0 : vector<16x1x1xf32> to vector<16x16x2xf32>
    %3 = arith.mulf %2, %1 : vector<16x16x2xf32>
    %cst = arith.constant dense<0.000000e+00> : vector<16x2xf32>
    %4 = vector.multi_reduction <add>, %3, %cst [0] : vector<16x16x2xf32> to vector<16x2xf32>
    %c0_5 = arith.constant 0 : index
    %c0_6 = arith.constant 0 : index
    %5 = vector.load %arg3[%c0_5, %c0_6] : memref<32x16xf32, #tpu.memory_space<vmem>>, vector<32x16xf32>
    %cst_7 = arith.constant dense<0.000000e+00> : vector<32x2xf32>
    %6 = tpu.matmul %5, %4, %cst_7 {dimension_numbers = #tpu.dot_dimension_numbers<[1], [0], [0], [1], [0, 0, 1, 1], [], []>} : vector<32x16xf32>, vector<16x2xf32>, vector<32x2xf32> -> vector<32x2xf32>
    %c0_8 = arith.constant 0 : index
    %c0_9 = arith.constant 0 : index
    %7 = vector.load %arg4[%c0_8, %c0_9] : memref<32x1xf32, #tpu.memory_space<vmem>>, vector<32x1xf32>
    %8 = vector.broadcast %7 : vector<32x1xf32> to vector<32x2xf32>
    %9 = arith.addf %6, %8 : vector<32x2xf32>
    %cst_10 = arith.constant 0.000000e+00 : f32
    %10 = vector.broadcast %cst_10 : f32 to vector<32x2xf32>
    %11 = arith.maximumf %9, %10 : vector<32x2xf32>
    %c0_11 = arith.constant 0 : index
    %c0_12 = arith.constant 0 : index
    %12 = vector.load %arg5[%c0_11, %c0_12] : memref<4x32xf32, #tpu.memory_space<vmem>>, vector<4x32xf32>
    %cst_13 = arith.constant dense<0.000000e+00> : vector<4x2xf32>
    %13 = tpu.matmul %12, %11, %cst_13 {dimension_numbers = #tpu.dot_dimension_numbers<[1], [0], [0], [1], [0, 0, 1, 1], [], []>} : vector<4x32xf32>, vector<32x2xf32>, vector<4x2xf32> -> vector<4x2xf32>
    %c0_14 = arith.constant 0 : index
    %c0_15 = arith.constant 0 : index
    %14 = vector.load %arg6[%c0_14, %c0_15] : memref<4x1xf32, #tpu.memory_space<vmem>>, vector<4x1xf32>
    %15 = vector.broadcast %14 : vector<4x1xf32> to vector<4x2xf32>
    %16 = arith.addf %13, %15 : vector<4x2xf32>
    %c0_16 = arith.constant 0 : index
    %c0_17 = arith.constant 0 : index
    %17 = vector.load %arg7[%c0_16, %c0_17] : memref<4x2xf32, #tpu.memory_space<vmem>>, vector<4x2xf32>
    tpu.vector_store %arg7[%c0_16, %c0_17], %16 {strides = array<i32>} : memref<4x2xf32, #tpu.memory_space<vmem>>, vector<4x2xf32>,
    return
  }
  func.func @transform_0(%arg0: i32) -> (i32, i32, i32) {
    %c0_i32 = arith.constant 0 : i32
    %c0_i32_0 = arith.constant 0 : i32
    %c0_i32_1 = arith.constant 0 : i32
    %c0_i32_2 = arith.constant 0 : i32
    return %c0_i32, %c0_i32_0, %c0_i32_1 : i32, i32, i32
  }
  func.func @transform_1(%arg0: i32) -> (i32, i32, i32) {
    %c0_i32 = arith.constant 0 : i32
    %c0_i32_0 = arith.constant 0 : i32
    %c0_i32_1 = arith.constant 0 : i32
    return %c0_i32, %c0_i32_0, %arg0 : i32, i32, i32
  }
  func.func @transform_2(%arg0: i32) -> (i32, i32) {
    %c0_i32 = arith.constant 0 : i32
    %c0_i32_0 = arith.constant 0 : i32
    %c0_i32_1 = arith.constant 0 : i32
    return %c0_i32, %c0_i32_0 : i32, i32
  }
  func.func @transform_3(%arg0: i32) -> (i32, i32) {
    %c0_i32 = arith.constant 0 : i32
    %c0_i32_0 = arith.constant 0 : i32
    %c0_i32_1 = arith.constant 0 : i32
    return %c0_i32, %c0_i32_0 : i32, i32
  }
  func.func @transform_4(%arg0: i32) -> (i32, i32) {
    %c0_i32 = arith.constant 0 : i32
    %c0_i32_0 = arith.constant 0 : i32
    %c0_i32_1 = arith.constant 0 : i32
    return %c0_i32, %c0_i32_0 : i32, i32
  }
  func.func @transform_5(%arg0: i32) -> (i32, i32) {
    %c0_i32 = arith.constant 0 : i32
    %c0_i32_0 = arith.constant 0 : i32
    %c0_i32_1 = arith.constant 0 : i32
    return %c0_i32, %c0_i32_0 : i32, i32
  }
  func.func @transform_6(%arg0: i32) -> (i32, i32) {
    %c0_i32 = arith.constant 0 : i32
    %c0_i32_0 = arith.constant 0 : i32
    return %c0_i32, %arg0 : i32, i32
  }
}

</mosaic_0001>

<llo_original>
// kernel: tpu_custom_call.1
$region0: #{tpu_custom_call.1}
  #allocation0 [shape = 'u32[]', space=smem, size = 0x4, offset = 0x4, fixed_abs, tag = 'smem constant byte address 0x4 - core index']
  #allocation1 [shape = 'u32[72,128]{1,0:T(1,128)}', space=vmem, size = 0x9000, scoped, tag = 'internal scratch']
  %s0 = inlined_call_operand.vmem [shape: f32[16,1,1], index: 0, kind: input, shape index: {}]
  %s1 = inlined_call_operand.vmem [shape: f32[16,16,2], index: 1, kind: input, shape index: {}]
  %s2 = inlined_call_operand.vmem [shape: f32[32,16], index: 2, kind: input, shape index: {}]
  %s3 = inlined_call_operand.vmem [shape: f32[32,1], index: 3, kind: input, shape index: {}]
  %s4 = inlined_call_operand.vmem [shape: f32[4,32], index: 4, kind: input, shape index: {}]
  %s5 = inlined_call_operand.vmem [shape: f32[4,1], index: 5, kind: input, shape index: {}]
  %s6 = inlined_call_operand.vmem [shape: f32[4,2], index: 6, kind: output, shape index: {}]
  %s7 = sld [smem:[#allocation0]]
  $region34: #{tpu_custom_call.1} parent=0
    _
  %s9 = ssub.s32 1, %s7
  %s10 = scalar_select 0, %s9, %s7
  // Predicated region
  $region2: #{tpu_custom_call.1} parent=0 // pred_check
    _
  $region3: #{tpu_custom_call.1} parent=0 // pred_check_branch
    %12 = sbr.rel (0) target = $region5
  $region4: #{tpu_custom_call.1} parent=0 // pred_region
    _
  $region5: #{tpu_custom_call.1} parent=0 // pred_fallthru
    _
  // Predicated region
  $region6: #{tpu_custom_call.1} parent=0 // pred_check
    _
  $region7: #{tpu_custom_call.1} parent=0 // pred_check_branch
    %14 = sbr.rel (0) target = $region9
  $region8: #{tpu_custom_call.1} parent=0 // pred_region
    _
  $region9: #{tpu_custom_call.1} parent=0 // pred_fallthru
    _
  // Predicated region
  $region10: #{tpu_custom_call.1} parent=0 // pred_check
    _
  $region11: #{tpu_custom_call.1} parent=0 // pred_check_branch
    %16 = sbr.rel (0) target = $region13
  $region12: #{tpu_custom_call.1} parent=0 // pred_region
    _
  $region13: #{tpu_custom_call.1} parent=0 // pred_fallthru
    _
  // Predicated region
  $region14: #{tpu_custom_call.1} parent=0 // pred_check
    _
  $region15: #{tpu_custom_call.1} parent=0 // pred_check_branch
    %18 = sbr.rel (0) target = $region17
  $region16: #{tpu_custom_call.1} parent=0 // pred_region
    _
  $region17: #{tpu_custom_call.1} parent=0 // pred_fallthru
    _
  // Predicated region
  $region18: #{tpu_custom_call.1} parent=0 // pred_check
    _
  $region19: #{tpu_custom_call.1} parent=0 // pred_check_branch
    %20 = sbr.rel (0) target = $region21
  $region20: #{tpu_custom_call.1} parent=0 // pred_region
    _
  $region21: #{tpu_custom_call.1} parent=0 // pred_fallthru
    _
  // Predicated region
  $region22: #{tpu_custom_call.1} parent=0 // pred_check
    _
  $region23: #{tpu_custom_call.1} parent=0 // pred_check_branch
    %22 = sbr.rel (0) target = $region25
  $region24: #{tpu_custom_call.1} parent=0 // pred_region
    _
  $region25: #{tpu_custom_call.1} parent=0 // pred_fallthru
    _
  %v23 = vld [vmem:[%s0] sm:$0x1]
  %v24 = vld [vmem:[%s0 + $0x1] sm:$0x1]
  %v25 = vld [vmem:[%s0 + $0x2] sm:$0x1]
  %v26 = vld [vmem:[%s0 + $0x3] sm:$0x1]
  %v27 = vld [vmem:[%s0 + $0x4] sm:$0x1]
  %v28 = vld [vmem:[%s0 + $0x5] sm:$0x1]
  %v29 = vld [vmem:[%s0 + $0x6] sm:$0x1]
  %v30 = vld [vmem:[%s0 + $0x7] sm:$0x1]
  %v31 = vld [vmem:[%s0 + $0x8] sm:$0x1]
  %v32 = vld [vmem:[%s0 + $0x9] sm:$0x1]
  %v33 = vld [vmem:[%s0 + $0xa] sm:$0x1]
  %v34 = vld [vmem:[%s0 + $0xb] sm:$0x1]
  %v35 = vld [vmem:[%s0 + $0xc] sm:$0x1]
  %v36 = vld [vmem:[%s0 + $0xd] sm:$0x1]
  %v37 = vld [vmem:[%s0 + $0xe] sm:$0x1]
  %v38 = vld [vmem:[%s0 + $0xf] sm:$0x1]
  %v39 = vld [vmem:[%s1] sm:$0xff]
  %v40 = vld [vmem:[%s1 + $0x8] sm:$0xff]
  %v41 = vld [vmem:[%s1 + $0x10] sm:$0xff]
  %v42 = vld [vmem:[%s1 + $0x18] sm:$0xff]
  %v43 = vld [vmem:[%s1 + $0x20] sm:$0xff]
  %v44 = vld [vmem:[%s1 + $0x28] sm:$0xff]
  %v45 = vld [vmem:[%s1 + $0x30] sm:$0xff]
  %v46 = vld [vmem:[%s1 + $0x38] sm:$0xff]
  %v47 = vld [vmem:[%s1 + $0x40] sm:$0xff]
  %v48 = vld [vmem:[%s1 + $0x48] sm:$0xff]
  %v49 = vld [vmem:[%s1 + $0x50] sm:$0xff]
  %v50 = vld [vmem:[%s1 + $0x58] sm:$0xff]
  %v51 = vld [vmem:[%s1 + $0x60] sm:$0xff]
  %v52 = vld [vmem:[%s1 + $0x68] sm:$0xff]
  %v53 = vld [vmem:[%s1 + $0x70] sm:$0xff]
  %v54 = vld [vmem:[%s1 + $0x78] sm:$0xff]
  %v55 = vld [vmem:[%s1 + $0x80] sm:$0xff]
  %v56 = vld [vmem:[%s1 + $0x88] sm:$0xff]
  %v57 = vld [vmem:[%s1 + $0x90] sm:$0xff]
  %v58 = vld [vmem:[%s1 + $0x98] sm:$0xff]
  %v59 = vld [vmem:[%s1 + $0xa0] sm:$0xff]
  %v60 = vld [vmem:[%s1 + $0xa8] sm:$0xff]
  %v61 = vld [vmem:[%s1 + $0xb0] sm:$0xff]
  %v62 = vld [vmem:[%s1 + $0xb8] sm:$0xff]
  %v63 = vld [vmem:[%s1 + $0xc0] sm:$0xff]
  %v64 = vld [vmem:[%s1 + $0xc8] sm:$0xff]
  %v65 = vld [vmem:[%s1 + $0xd0] sm:$0xff]
  %v66 = vld [vmem:[%s1 + $0xd8] sm:$0xff]
  %v67 = vld [vmem:[%s1 + $0xe0] sm:$0xff]
  %v68 = vld [vmem:[%s1 + $0xe8] sm:$0xff]
  %v69 = vld [vmem:[%s1 + $0xf0] sm:$0xff]
  %v70 = vld [vmem:[%s1 + $0xf8] sm:$0xff]
  %v87 = vperm.slane %v23, 0
  %v88 = vperm.slane %v24, 0
  %v89 = vperm.slane %v25, 0
  %v90 = vperm.slane %v26, 0
  %v91 = vperm.slane %v27, 0
  %v92 = vperm.slane %v28, 0
  %v93 = vperm.slane %v29, 0
  %v94 = vperm.slane %v30, 0
  %v95 = vperm.slane %v31, 0
  %v96 = vperm.slane %v32, 0
  %v97 = vperm.slane %v33, 0
  %v98 = vperm.slane %v34, 0
  %v99 = vperm.slane %v35, 0
  %v100 = vperm.slane %v36, 0
  %v101 = vperm.slane %v37, 0
  %v102 = vperm.slane %v38, 0
  %103 = vset.pattern.permute.xlu0 0
  %104 = vperm.xlu0 %103, %v87
  %v105 = vpop.permute.xlu0 %104
  %107 = vset.pattern.permute.xlu0 0
  %108 = vperm.xlu0 %107, %v88
  %v109 = vpop.permute.xlu0 %108
  %111 = vset.pattern.permute.xlu0 0
  %112 = vperm.xlu0 %111, %v89
  %v113 = vpop.permute.xlu0 %112
  %115 = vset.pattern.permute.xlu0 0
  %116 = vperm.xlu0 %115, %v90
  %v117 = vpop.permute.xlu0 %116
  %119 = vset.pattern.permute.xlu0 0
  %120 = vperm.xlu0 %119, %v91
  %v121 = vpop.permute.xlu0 %120
  %123 = vset.pattern.permute.xlu0 0
  %124 = vperm.xlu0 %123, %v92
  %v125 = vpop.permute.xlu0 %124
  %127 = vset.pattern.permute.xlu0 0
  %128 = vperm.xlu0 %127, %v93
  %v129 = vpop.permute.xlu0 %128
  %131 = vset.pattern.permute.xlu0 0
  %132 = vperm.xlu0 %131, %v94
  %v133 = vpop.permute.xlu0 %132
  %135 = vset.pattern.permute.xlu0 0
  %136 = vperm.xlu0 %135, %v95
  %v137 = vpop.permute.xlu0 %136
  %139 = vset.pattern.permute.xlu0 0
  %140 = vperm.xlu0 %139, %v96
  %v141 = vpop.permute.xlu0 %140
  %143 = vset.pattern.permute.xlu0 0
  %144 = vperm.xlu0 %143, %v97
  %v145 = vpop.permute.xlu0 %144
  %147 = vset.pattern.permute.xlu0 0
  %148 = vperm.xlu0 %147, %v98
  %v149 = vpop.permute.xlu0 %148
  %151 = vset.pattern.permute.xlu0 0
  %152 = vperm.xlu0 %151, %v99
  %v153 = vpop.permute.xlu0 %152
  %155 = vset.pattern.permute.xlu0 0
  %156 = vperm.xlu0 %155, %v100
  %v157 = vpop.permute.xlu0 %156
  %159 = vset.pattern.permute.xlu0 0
  %160 = vperm.xlu0 %159, %v101
  %v161 = vpop.permute.xlu0 %160
  %163 = vset.pattern.permute.xlu0 0
  %164 = vperm.xlu0 %163, %v102
  %v165 = vpop.permute.xlu0 %164
  %v167 = vmul.f32 %v105, %v39
  %v168 = vmul.f32 %v105, %v40
  %v169 = vmul.f32 %v109, %v41
  %v170 = vmul.f32 %v109, %v42
  %v171 = vmul.f32 %v113, %v43
  %v172 = vmul.f32 %v113, %v44
  %v173 = vmul.f32 %v117, %v45
  %v174 = vmul.f32 %v117, %v46
  %v175 = vmul.f32 %v121, %v47
  %v176 = vmul.f32 %v121, %v48
  %v177 = vmul.f32 %v125, %v49
  %v178 = vmul.f32 %v125, %v50
  %v179 = vmul.f32 %v129, %v51
  %v180 = vmul.f32 %v129, %v52
  %v181 = vmul.f32 %v133, %v53
  %v182 = vmul.f32 %v133, %v54
  %v183 = vmul.f32 %v137, %v55
  %v184 = vmul.f32 %v137, %v56
  %v185 = vmul.f32 %v141, %v57
  %v186 = vmul.f32 %v141, %v58
  %v187 = vmul.f32 %v145, %v59
  %v188 = vmul.f32 %v145, %v60
  %v189 = vmul.f32 %v149, %v61
  %v190 = vmul.f32 %v149, %v62
  %v191 = vmul.f32 %v153, %v63
  %v192 = vmul.f32 %v153, %v64
  %v193 = vmul.f32 %v157, %v65
  %v194 = vmul.f32 %v157, %v66
  %v195 = vmul.f32 %v161, %v67
  %v196 = vmul.f32 %v161, %v68
  %v197 = vmul.f32 %v165, %v69
  %v198 = vmul.f32 %v165, %v70
  %vm199 = vcmask 15360
  %v200 = vsel %vm199, %v167, 0.0
  %v201 = vsel %vm199, %v169, 0.0
  %v202 = vadd.f32 %v200, %v201
  %v203 = vsel %vm199, %v171, 0.0
  %v204 = vadd.f32 %v202, %v203
  %v205 = vsel %vm199, %v173, 0.0
  %v206 = vadd.f32 %v204, %v205
  %v207 = vsel %vm199, %v175, 0.0
  %v208 = vadd.f32 %v206, %v207
  %v209 = vsel %vm199, %v177, 0.0
  %v210 = vadd.f32 %v208, %v209
  %v211 = vsel %vm199, %v179, 0.0
  %v212 = vadd.f32 %v210, %v211
  %v213 = vsel %vm199, %v181, 0.0
  %v214 = vadd.f32 %v212, %v213
  %v215 = vsel %vm199, %v183, 0.0
  %v216 = vadd.f32 %v214, %v215
  %v217 = vsel %vm199, %v185, 0.0
  %v218 = vadd.f32 %v216, %v217
  %v219 = vsel %vm199, %v187, 0.0
  %v220 = vadd.f32 %v218, %v219
  %v221 = vsel %vm199, %v189, 0.0
  %v222 = vadd.f32 %v220, %v221
  %v223 = vsel %vm199, %v191, 0.0
  %v224 = vadd.f32 %v222, %v223
  %v225 = vsel %vm199, %v193, 0.0
  %v226 = vadd.f32 %v224, %v225
  %v227 = vsel %vm199, %v195, 0.0
  %v228 = vadd.f32 %v226, %v227
  %v229 = vsel %vm199, %v197, 0.0
  %v230 = vadd.f32 %v228, %v229
  %v231 = vsel %vm199, %v168, 0.0
  %v232 = vsel %vm199, %v170, 0.0
  %v233 = vadd.f32 %v231, %v232
  %v234 = vsel %vm199, %v172, 0.0
  %v235 = vadd.f32 %v233, %v234
  %v236 = vsel %vm199, %v174, 0.0
  %v237 = vadd.f32 %v235, %v236
  %v238 = vsel %vm199, %v176, 0.0
  %v239 = vadd.f32 %v237, %v238
  %v240 = vsel %vm199, %v178, 0.0
  %v241 = vadd.f32 %v239, %v240
  %v242 = vsel %vm199, %v180, 0.0
  %v243 = vadd.f32 %v241, %v242
  %v244 = vsel %vm199, %v182, 0.0
  %v245 = vadd.f32 %v243, %v244
  %v246 = vsel %vm199, %v184, 0.0
  %v247 = vadd.f32 %v245, %v246
  %v248 = vsel %vm199, %v186, 0.0
  %v249 = vadd.f32 %v247, %v248
  %v250 = vsel %vm199, %v188, 0.0
  %v251 = vadd.f32 %v249, %v250
  %v252 = vsel %vm199, %v190, 0.0
  %v253 = vadd.f32 %v251, %v252
  %v254 = vsel %vm199, %v192, 0.0
  %v255 = vadd.f32 %v253, %v254
  %v256 = vsel %vm199, %v194, 0.0
  %v257 = vadd.f32 %v255, %v256
  %v258 = vsel %vm199, %v196, 0.0
  %v259 = vadd.f32 %v257, %v258
  %v260 = vsel %vm199, %v198, 0.0
  %v261 = vadd.f32 %v259, %v260
  %v262 = vld [vmem:[%s2] sm:$0xff]
  %v263 = vld [vmem:[%s2 + $0x8] sm:$0xff]
  %v264 = vld [vmem:[%s2 + $0x10] sm:$0xff]
  %v265 = vld [vmem:[%s2 + $0x18] sm:$0xff]
  %v266 = vld [vmem:[%s3] sm:$0xff]
  %v267 = vld [vmem:[%s3 + $0x8] sm:$0xff]
  %v268 = vld [vmem:[%s3 + $0x10] sm:$0xff]
  %v269 = vld [vmem:[%s3 + $0x18] sm:$0xff]
  %271 = vset.pattern.permute.xlu0 0
  %272 = vperm.xlu0 %271, %v266
  %v273 = vpop.permute.xlu0 %272
  %276 = vset.pattern.permute.xlu0 0
  %277 = vperm.xlu0 %276, %v267
  %v278 = vpop.permute.xlu0 %277
  %281 = vset.pattern.permute.xlu0 0
  %282 = vperm.xlu0 %281, %v268
  %v283 = vpop.permute.xlu0 %282
  %286 = vset.pattern.permute.xlu0 0
  %287 = vperm.xlu0 %286, %v269
  %v288 = vpop.permute.xlu0 %287
  %vm290 = vcmask 130048
  %v292 = vsel %vm290, %v262, 0
  %v295 = vsel %vm290, %v263, 0
  %v298 = vsel %vm290, %v264, 0
  %v301 = vsel %vm290, %v265, 0
  %303 = vmatpush.msra.mxu0 0.0
  %304 = vmatpush.msra.mxu0 0.0
  %305 = vmatpush.msra.mxu0 0.0
  %306 = vmatpush.msra.mxu0 0.0
  %307 = vmatpush.msra.mxu0 0.0
  %308 = vmatpush.msra.mxu0 0.0
  %309 = vmatpush.msra.mxu0 0.0
  %310 = vmatpush.msra.mxu0 0.0
  %311 = vmatpush.msra.mxu0 0.0
  %312 = vmatpush.msra.mxu0 0.0
  %313 = vmatpush.msra.mxu0 0.0
  %314 = vmatpush.msra.mxu0 0.0
  %315 = vmatpush.msra.mxu0 0.0
  %316 = vmatpush.msra.mxu0 0.0
  %317 = vmatpush.msra.mxu0 %v261
  %318 = vmatpush.msra.mxu0 %v230
  %319 = vmatmul.f32.gmra.mxu0 %v292
  %v320 = vpop.f32.mrf.mxu0
  %v321 = vadd.f32 %v273, %v320
  %322 = vmatmul.f32.gmra.mxu0 %v295
  %v323 = vpop.f32.mrf.mxu0
  %v324 = vadd.f32 %v278, %v323
  %325 = vmatmul.f32.gmra.mxu0 %v298
  %v326 = vpop.f32.mrf.mxu0
  %v327 = vadd.f32 %v283, %v326
  %328 = vmatmul.f32.gmra.mxu0 %v301
  %v329 = vpop.f32.mrf.mxu0
  %v330 = vadd.f32 %v288, %v329
  %331 = vdwg.mxu0
  %v332 = vmax.f32 %v321, 0.0
  %v333 = vmax.f32 %v324, 0.0
  %v334 = vmax.f32 %v327, 0.0
  %v335 = vmax.f32 %v330, 0.0
  %v336 = vld [vmem:[%s4] sm:$0xf]
  %v337 = vld [vmem:[%s5] sm:$0xf]
  %339 = vset.pattern.permute.xlu0 0
  %340 = vperm.xlu0 %339, %v337
  %v341 = vpop.permute.xlu0 %340
  %vm343 = vcmask 261120
  %v345 = vsel %vm343, %v336, 0
  %347 = vmatpush.msra.mxu0 0.0
  %348 = vmatpush.msra.mxu0 0.0
  %349 = vmatpush.msra.mxu0 0.0
  %350 = vmatpush.msra.mxu0 0.0
  %351 = vmatpush.msra.mxu0 0.0
  %352 = vmatpush.msra.mxu0 0.0
  %353 = vmatpush.msra.mxu0 0.0
  %354 = vmatpush.msra.mxu0 0.0
  %355 = vmatpush.msra.mxu0 0.0
  %356 = vmatpush.msra.mxu0 0.0
  %357 = vmatpush.msra.mxu0 0.0
  %358 = vmatpush.msra.mxu0 0.0
  %359 = vmatpush.msra.mxu0 %v335
  %360 = vmatpush.msra.mxu0 %v334
  %361 = vmatpush.msra.mxu0 %v333
  %362 = vmatpush.msra.mxu0 %v332
  %363 = vmatmul.f32.gmra.mxu0 %v345
  %v364 = vpop.f32.mrf.mxu0
  %v365 = vadd.f32 %v341, %v364
  %366 = vdwg.mxu0
  %vm367 = vcmask 11264
  %368 = vst.msk [vmem:[%s6] sm:$0xf] %vm367, %v365
  // Predicated region
  $region26: #{tpu_custom_call.1} parent=0 // pred_check
    _
  $region27: #{tpu_custom_call.1} parent=0 // pred_check_branch
    %370 = sbr.rel (0) target = $region29
  $region28: #{tpu_custom_call.1} parent=0 // pred_region
    _
  $region29: #{tpu_custom_call.1} parent=0 // pred_fallthru
    _
  // Predicated region
  $region30: #{tpu_custom_call.1} parent=0 // pred_check
    _
  $region31: #{tpu_custom_call.1} parent=0 // pred_check_branch
    %372 = sbr.rel (0) target = $region33
  $region32: #{tpu_custom_call.1} parent=0 // pred_region
    _
  $region33: #{tpu_custom_call.1} parent=0 // pred_fallthru
    _

</llo_original>
